<compile_context>
chip_gen: v7x
topology: tpu7x:2x2x1
jax: 0.10.0
libtpu: 0.0.40
codegen_flags: <defaults>
</compile_context>

<pallas_src>
import functools

import jax
import jax.numpy as jnp
from jax import lax
from jax.experimental import pallas as pl
from jax.experimental.pallas import tpu as pltpu

KH = KW = 3
CIN = 3
COUT = 64
KTAPS = 32  # 3*3*3 = 27 conv taps, zero-padded to 32 for clean MXU alignment


# --------------------------------------------------------------------------
# Kernel 1: im2col-matmul conv3x3 (MXU) + bias + ReLU + fused 2x2 maxpool
# --------------------------------------------------------------------------
def _conv_relu_pool_kernel(p_ref, w_ref, b_ref, o_ref, z_s, *, W, Wp, TH):
    # p_ref: (1, 2*TH*W, KTAPS) bf16  im2col rows for 2*TH conv rows of one image
    # w_ref: (KTAPS, Cout)      bf16  conv weights (taps x out-channels)
    # b_ref: (1, Cout)          f32   conv bias
    # o_ref: (1, TH*Wp, Cout)   bf16  pooled output rows (spatial-major, HWC)
    # z_s  : (W, Cout) f32 VMEM       one H-pooled conv row pair
    p = p_ref[0]                                            # (2*TH*W, KTAPS)
    y = jnp.dot(p, w_ref[...], preferred_element_type=jnp.float32)
    y = jnp.maximum(y + b_ref[...], 0.0)                    # conv + bias + ReLU

    # Fused MaxPool 2x2 stride 2: pool each conv row pair immediately.
    # Slices start at multiples of W (multiple of 8) -> sublane-aligned.
    for r in range(TH):                                     # static small unroll
        row0 = y[2 * r * W:(2 * r + 1) * W, :]              # conv row 2r  (W, Cout)
        row1 = y[(2 * r + 1) * W:(2 * r + 2) * W, :]        # conv row 2r+1
        z_s[...] = jnp.maximum(row0, row1)                  # pooled over H
        c0 = z_s[pl.ds(0, Wp, stride=2), :]                 # even columns
        c1 = z_s[pl.ds(1, Wp, stride=2), :]                 # odd columns
        o_ref[0, r * Wp:(r + 1) * Wp, :] = (
            jnp.maximum(c0, c1).astype(o_ref.dtype))


def conv_relu_pool(x_nchw, w_mat, b, *, th=16):
    """x_nchw: (N, 3, H, W) f32. w_mat: (KTAPS, Cout) bf16.

    Returns pooled features (N, Hp*Wp, Cout) in bf16, (h, w, c) order.
    """
    N, Cin, H, W = x_nchw.shape
    Cout = w_mat.shape[1]
    Hp, Wp = H // 2, W // 2
    th = min(th, Hp)
    assert H % 2 == 0 and W % 2 == 0 and Hp % th == 0

    # im2col in the wrapper (bf16); tap order ci*9 + kh*3 + kw matches
    # conv_w.reshape(Cout, 27).
    # TODO(synk): building the 27-tap patches inside the kernel from raw padded
    # rows (manual DMA) would remove this HBM round-trip entirely.
    xb = x_nchw.astype(jnp.bfloat16)
    xp = jnp.pad(xb, ((0, 0), (0, 0), (1, 1), (1, 1)))
    slabs = [xp[:, :, kh:kh + H, kw:kw + W]
             for kh in range(KH) for kw in range(KW)]       # 9 x (N, Cin, H, W)
    pat = jnp.stack(slabs, axis=2).reshape(N, Cin * KH * KW, H * W)
    pat = jnp.transpose(pat, (0, 2, 1))                     # (N, H*W, 27)
    pat = jnp.pad(pat, ((0, 0), (0, 0), (0, KTAPS - Cin * KH * KW)))

    kernel = functools.partial(_conv_relu_pool_kernel, W=W, Wp=Wp, TH=th)
    return pl.pallas_call(
        kernel,
        out_shape=jax.ShapeDtypeStruct((N, Hp * Wp, Cout), jnp.bfloat16),
        grid_spec=pltpu.PrefetchScalarGridSpec(
            num_scalar_prefetch=0,
            grid=(N, Hp // th),
            in_specs=[
                pl.BlockSpec((1, 2 * th * W, KTAPS), lambda n, i: (n, i, 0)),
                pl.BlockSpec((KTAPS, Cout), lambda n, i: (0, 0)),
                pl.BlockSpec((1, Cout), lambda n, i: (0, 0)),
            ],
            out_specs=pl.BlockSpec((1, th * Wp, Cout), lambda n, i: (n, i, 0)),
            scratch_shapes=[pltpu.VMEM((W, Cout), jnp.float32)],
        ),
        compiler_params=pltpu.CompilerParams(
            dimension_semantics=("parallel", "parallel")),
    )(pat, w_mat, b.reshape(1, Cout))


# --------------------------------------------------------------------------
# Kernel 2: K-blocked Linear(bf16) -> ReLU -> (Dropout) -> Linear, split over
# D2 halves so v7x's two TensorCores both stream the dominant fc1 weights.
# --------------------------------------------------------------------------
def _mlp_kernel(x_ref, w1_ref, b1_ref, w2_ref, o_ref, acc_ref):
    k = pl.program_id(1)

    @pl.when(k == 0)
    def _init():
        acc_ref[...] = jnp.zeros_like(acc_ref)

    acc_ref[...] += jnp.dot(x_ref[...], w1_ref[...],
                            preferred_element_type=jnp.float32)

    @pl.when(k == pl.num_programs(1) - 1)
    def _finalize():
        h = jnp.maximum(acc_ref[...] + b1_ref[...], 0.0)
        # TODO(synk): nn.Dropout() is the identity here (eval-mode forward);
        # the training-mode stochastic mask is intentionally not emulated.
        o_ref[0] = jnp.dot(h.astype(jnp.bfloat16), w2_ref[...],
                           preferred_element_type=jnp.float32)


def mlp(x, w1, b1, w2, b2, *, tk=8192, nsplit=2):
    """x: (N, D1) bf16; w1: (D1, D2) bf16; w2: (D2, D3) bf16. Returns (N, D3) f32."""
    N, D1 = x.shape
    D2 = w1.shape[1]
    D3 = w2.shape[1]
    tk = min(tk, D1)
    assert D1 % tk == 0 and D2 % nsplit == 0
    dh = D2 // nsplit

    # Double-buffered bf16 blocks of x (N, tk) and w1 (tk, dh) dominate VMEM.
    vmem_limit = int(min(60 * 1024 * 1024,
                         max(32 * 1024 * 1024,
                             (8 << 20) + 4 * tk * (dh + N) * 2)))

    partial = pl.pallas_call(
        _mlp_kernel,
        out_shape=jax.ShapeDtypeStruct((nsplit, N, D3), jnp.float32),
        grid_spec=pltpu.PrefetchScalarGridSpec(
            num_scalar_prefetch=0,
            grid=(nsplit, D1 // tk),
            in_specs=[
                pl.BlockSpec((N, tk), lambda h, k: (0, k)),    # activations
                pl.BlockSpec((tk, dh), lambda h, k: (k, h)),   # fc1 weights (streamed)
                pl.BlockSpec((1, dh), lambda h, k: (0, h)),    # fc1 bias half
                pl.BlockSpec((dh, D3), lambda h, k: (h, 0)),   # fc2 weight half
            ],
            out_specs=pl.BlockSpec((1, N, D3), lambda h, k: (h, 0, 0)),
            scratch_shapes=[pltpu.VMEM((N, dh), jnp.float32)],
        ),
        compiler_params=pltpu.CompilerParams(
            dimension_semantics=("parallel", "arbitrary"),
            vmem_limit_bytes=vmem_limit),
    )(x, w1, b1.reshape(1, D2), w2)

    return partial.sum(axis=0) + b2


# --------------------------------------------------------------------------
# Parameters & model wrapper
# --------------------------------------------------------------------------
def init_params(key, H, W):
    """PyTorch-layout parameters: conv (O, I, KH, KW); linear (out, in)."""
    Hp, Wp = H // 2, W // 2
    D1, D2, D3 = COUT * Hp * Wp, 256, 5
    ks = jax.random.split(key, 6)
    return {
        "conv_w": jax.random.normal(ks[0], (COUT, CIN, KH, KW), jnp.float32) * 0.05,
        "conv_b": jax.random.normal(ks[1], (COUT,), jnp.float32) * 0.05,
        "fc1_w": jax.random.normal(ks[2], (D2, D1), jnp.float32) * 0.02,
        "fc1_b": jax.random.normal(ks[3], (D2,), jnp.float32) * 0.02,
        "fc2_w": jax.random.normal(ks[4], (D3, D2), jnp.float32) * 0.02,
        "fc2_b": jax.random.normal(ks[5], (D3,), jnp.float32) * 0.02,
    }


def prepare_params(p, H, W):
    """One-time offline conversion of PyTorch-layout params into kernel layout."""
    Cout, Cin, kh, kw = p["conv_w"].shape
    Hp, Wp = H // 2, W // 2
    D2, D1 = p["fc1_w"].shape
    # Conv: (Cout, 27) -> (27, Cout), zero-pad taps to KTAPS, bf16.
    w_mat = p["conv_w"].reshape(Cout, Cin * kh * kw).T
    w_mat = jnp.pad(w_mat, ((0, KTAPS - Cin * kh * kw), (0, 0)))
    # fc1: reorder input columns from PyTorch's (c, h, w) flatten order to the
    # kernel's (h, w, c) pooled-feature order, transpose to (in, out), bf16.
    fc1 = p["fc1_w"].reshape(D2, Cout, Hp, Wp).transpose(0, 2, 3, 1).reshape(D2, D1)
    return {
        "conv_w_mat": w_mat.astype(jnp.bfloat16),
        "conv_b": p["conv_b"],
        "fc1_w": fc1.T.astype(jnp.bfloat16),          # (D1, D2), K-streamed
        "fc1_b": p["fc1_b"],
        "fc2_w": p["fc2_w"].T.astype(jnp.bfloat16),   # (D2, D3)
        "fc2_b": p["fc2_b"],
    }


def disaster_detection_forward(x_nchw, kparams):
    """x_nchw: (N, 3, H, W) float32 (PyTorch layout). Returns (N, 5) logits."""
    feat = conv_relu_pool(x_nchw, kparams["conv_w_mat"], kparams["conv_b"])
    flat = feat.reshape(feat.shape[0], -1)   # bf16, (h, w, c) order; fc1_w pre-permuted
    return mlp(flat, kparams["fc1_w"], kparams["fc1_b"],
               kparams["fc2_w"], kparams["fc2_b"])


def reference_forward(x_nchw, p):
    """Pure-JAX reference on PyTorch-layout params (mirrors the bf16 choices)."""
    xb = x_nchw.astype(jnp.bfloat16)
    wc = p["conv_w"].astype(jnp.bfloat16)
    y = lax.conv_general_dilated(xb, wc, (1, 1), "SAME",
                                 dimension_numbers=("NCHW", "OIHW", "NCHW"),
                                 preferred_element_type=jnp.float32)
    y = jnp.maximum(y + p["conv_b"][None, :, None, None], 0.0)
    y = lax.reduce_window(y, -jnp.inf, lax.max,
                          (1, 1, 2, 2), (1, 1, 2, 2), "VALID")
    flat = y.reshape(y.shape[0], -1)                       # (c, h, w) order
    w1 = p["fc1_w"].astype(jnp.bfloat16)
    h = jnp.dot(flat.astype(jnp.bfloat16), w1.T,
                preferred_element_type=jnp.float32) + p["fc1_b"]
    h = jnp.maximum(h, 0.0)
    w2 = p["fc2_w"].astype(jnp.bfloat16)
    return jnp.dot(h.astype(jnp.bfloat16), w2.T,
                   preferred_element_type=jnp.float32) + p["fc2_b"]


if __name__ == "__main__":
    N, H, W = 2, 16, 16
    key = jax.random.PRNGKey(0)
    kx, kp = jax.random.split(key)
    x = jax.random.normal(kx, (N, CIN, H, W), jnp.float32)
    params = init_params(kp, H, W)
    kparams = prepare_params(params, H, W)

    out = jax.block_until_ready(disaster_detection_forward(x, kparams))
    ref = jax.block_until_ready(reference_forward(x, params))

    assert out.shape == (N, 5), out.shape
    assert jnp.allclose(out, ref, rtol=5e-3, atol=5e-3), (out, ref)
    print("KERNEL_OK")
</pallas_src>

<mosaic_0001>
module attributes {stable_mosaic.version = 11 : i64} {
  func.func @_conv_relu_pool_kernel(%arg0: i32, %arg1: i32, %arg2: memref<1x256x32xbf16, #tpu.memory_space<vmem>>, %arg3: memref<32x64xbf16, #tpu.memory_space<vmem>>, %arg4: memref<1x64xf32, #tpu.memory_space<vmem>>, %arg5: memref<1x64x64xbf16, #tpu.memory_space<vmem>>, %arg6: memref<16x64xf32, #tpu.memory_space<vmem>>) attributes {dimension_semantics = [#tpu.dimension_semantics<parallel>, #tpu.dimension_semantics<parallel>], iteration_bounds = array<i64: 2, 1>, scalar_prefetch = 0 : i64, scratch_operands = 1 : i64, tpu.core_type = #tpu.core_type<tc>, window_params = [{transform_indices = @transform_0, window_bounds = array<i64: 1, 256, 32>}, {pipeline_mode = #tpu.pipeline_mode<synchronous>, transform_indices = @transform_1, window_bounds = array<i64: 32, 64>}, {pipeline_mode = #tpu.pipeline_mode<synchronous>, transform_indices = @transform_2, window_bounds = array<i64: 1, 64>}, {transform_indices = @transform_3, window_bounds = array<i64: 1, 64, 64>}]} {
    %c0 = arith.constant 0 : index
    %c0_0 = arith.constant 0 : index
    %c0_1 = arith.constant 0 : index
    %0 = vector.load %arg2[%c0, %c0_0, %c0_1] : memref<1x256x32xbf16, #tpu.memory_space<vmem>>, vector<1x256x32xbf16>
    %1 = vector.shape_cast %0 : vector<1x256x32xbf16> to vector<256x32xbf16>
    %c0_2 = arith.constant 0 : index
    %c0_3 = arith.constant 0 : index
    %2 = vector.load %arg3[%c0_2, %c0_3] : memref<32x64xbf16, #tpu.memory_space<vmem>>, vector<32x64xbf16>
    %cst = arith.constant dense<0.000000e+00> : vector<256x64xf32>
    %3 = tpu.matmul %1, %2, %cst {dimension_numbers = #tpu.dot_dimension_numbers<[1], [0], [0], [1], [0, 0, 1, 1], [], []>} : vector<256x32xbf16>, vector<32x64xbf16>, vector<256x64xf32> -> vector<256x64xf32>
    %c0_4 = arith.constant 0 : index
    %c0_5 = arith.constant 0 : index
    %4 = vector.load %arg4[%c0_4, %c0_5] : memref<1x64xf32, #tpu.memory_space<vmem>>, vector<1x64xf32>
    %5 = vector.broadcast %4 : vector<1x64xf32> to vector<256x64xf32>
    %6 = arith.addf %3, %5 : vector<256x64xf32>
    %cst_6 = arith.constant 0.000000e+00 : f32
    %7 = vector.broadcast %cst_6 : f32 to vector<256x64xf32>
    %8 = arith.maximumf %6, %7 : vector<256x64xf32>
    %9 = vector.extract_strided_slice %8 {offsets = [0, 0], sizes = [16, 64], strides = [1, 1]} : vector<256x64xf32> to vector<16x64xf32>
    %10 = vector.extract_strided_slice %8 {offsets = [16, 0], sizes = [16, 64], strides = [1, 1]} : vector<256x64xf32> to vector<16x64xf32>
    %11 = arith.maximumf %9, %10 : vector<16x64xf32>
    %c0_7 = arith.constant 0 : index
    %c0_8 = arith.constant 0 : index
    %12 = vector.load %arg6[%c0_7, %c0_8] : memref<16x64xf32, #tpu.memory_space<vmem>>, vector<16x64xf32>
    tpu.vector_store %arg6[%c0_7, %c0_8], %11 {strides = array<i32>} : memref<16x64xf32, #tpu.memory_space<vmem>>, vector<16x64xf32>,
    %c0_9 = arith.constant 0 : index
    %c0_10 = arith.constant 0 : index
    %13 = tpu.strided_load %arg6[%c0_9, %c0_10] {strides = array<i32: 2, 1>} : memref<16x64xf32, #tpu.memory_space<vmem>>, vector<8x64xf32>
    %c1 = arith.constant 1 : index
    %c0_11 = arith.constant 0 : index
    %14 = tpu.strided_load %arg6[%c1, %c0_11] {strides = array<i32: 2, 1>} : memref<16x64xf32, #tpu.memory_space<vmem>>, vector<8x64xf32>
    %15 = arith.maximumf %13, %14 : vector<8x64xf32>
    %16 = arith.truncf %15 : vector<8x64xf32> to vector<8x64xbf16>
    %c0_12 = arith.constant 0 : index
    %c0_13 = arith.constant 0 : index
    %c0_14 = arith.constant 0 : index
    %17 = vector.load %arg5[%c0_12, %c0_13, %c0_14] : memref<1x64x64xbf16, #tpu.memory_space<vmem>>, vector<1x8x64xbf16>
    %18 = vector.shape_cast %17 : vector<1x8x64xbf16> to vector<8x64xbf16>
    %19 = vector.shape_cast %16 : vector<8x64xbf16> to vector<1x8x64xbf16>
    tpu.vector_store %arg5[%c0_12, %c0_13, %c0_14], %19 {strides = array<i32>} : memref<1x64x64xbf16, #tpu.memory_space<vmem>>, vector<1x8x64xbf16>,
    %20 = vector.extract_strided_slice %8 {offsets = [32, 0], sizes = [16, 64], strides = [1, 1]} : vector<256x64xf32> to vector<16x64xf32>
    %21 = vector.extract_strided_slice %8 {offsets = [48, 0], sizes = [16, 64], strides = [1, 1]} : vector<256x64xf32> to vector<16x64xf32>
    %22 = arith.maximumf %20, %21 : vector<16x64xf32>
    %c0_15 = arith.constant 0 : index
    %c0_16 = arith.constant 0 : index
    %23 = vector.load %arg6[%c0_15, %c0_16] : memref<16x64xf32, #tpu.memory_space<vmem>>, vector<16x64xf32>
    tpu.vector_store %arg6[%c0_15, %c0_16], %22 {strides = array<i32>} : memref<16x64xf32, #tpu.memory_space<vmem>>, vector<16x64xf32>,
    %c0_17 = arith.constant 0 : index
    %c0_18 = arith.constant 0 : index
    %24 = tpu.strided_load %arg6[%c0_17, %c0_18] {strides = array<i32: 2, 1>} : memref<16x64xf32, #tpu.memory_space<vmem>>, vector<8x64xf32>
    %c1_19 = arith.constant 1 : index
    %c0_20 = arith.constant 0 : index
    %25 = tpu.strided_load %arg6[%c1_19, %c0_20] {strides = array<i32: 2, 1>} : memref<16x64xf32, #tpu.memory_space<vmem>>, vector<8x64xf32>
    %26 = arith.maximumf %24, %25 : vector<8x64xf32>
    %27 = arith.truncf %26 : vector<8x64xf32> to vector<8x64xbf16>
    %c0_21 = arith.constant 0 : index
    %c8 = arith.constant 8 : index
    %c0_22 = arith.constant 0 : index
    %28 = vector.load %arg5[%c0_21, %c8, %c0_22] : memref<1x64x64xbf16, #tpu.memory_space<vmem>>, vector<1x8x64xbf16>
    %29 = vector.shape_cast %28 : vector<1x8x64xbf16> to vector<8x64xbf16>
    %30 = vector.shape_cast %27 : vector<8x64xbf16> to vector<1x8x64xbf16>
    tpu.vector_store %arg5[%c0_21, %c8, %c0_22], %30 {strides = array<i32>} : memref<1x64x64xbf16, #tpu.memory_space<vmem>>, vector<1x8x64xbf16>,
    %31 = vector.extract_strided_slice %8 {offsets = [64, 0], sizes = [16, 64], strides = [1, 1]} : vector<256x64xf32> to vector<16x64xf32>
    %32 = vector.extract_strided_slice %8 {offsets = [80, 0], sizes = [16, 64], strides = [1, 1]} : vector<256x64xf32> to vector<16x64xf32>
    %33 = arith.maximumf %31, %32 : vector<16x64xf32>
    %c0_23 = arith.constant 0 : index
    %c0_24 = arith.constant 0 : index
    %34 = vector.load %arg6[%c0_23, %c0_24] : memref<16x64xf32, #tpu.memory_space<vmem>>, vector<16x64xf32>
    tpu.vector_store %arg6[%c0_23, %c0_24], %33 {strides = array<i32>} : memref<16x64xf32, #tpu.memory_space<vmem>>, vector<16x64xf32>,
    %c0_25 = arith.constant 0 : index
    %c0_26 = arith.constant 0 : index
    %35 = tpu.strided_load %arg6[%c0_25, %c0_26] {strides = array<i32: 2, 1>} : memref<16x64xf32, #tpu.memory_space<vmem>>, vector<8x64xf32>
    %c1_27 = arith.constant 1 : index
    %c0_28 = arith.constant 0 : index
    %36 = tpu.strided_load %arg6[%c1_27, %c0_28] {strides = array<i32: 2, 1>} : memref<16x64xf32, #tpu.memory_space<vmem>>, vector<8x64xf32>
    %37 = arith.maximumf %35, %36 : vector<8x64xf32>
    %38 = arith.truncf %37 : vector<8x64xf32> to vector<8x64xbf16>
    %c0_29 = arith.constant 0 : index
    %c16 = arith.constant 16 : index
    %c0_30 = arith.constant 0 : index
    %39 = vector.load %arg5[%c0_29, %c16, %c0_30] : memref<1x64x64xbf16, #tpu.memory_space<vmem>>, vector<1x8x64xbf16>
    %40 = vector.shape_cast %39 : vector<1x8x64xbf16> to vector<8x64xbf16>
    %41 = vector.shape_cast %38 : vector<8x64xbf16> to vector<1x8x64xbf16>
    tpu.vector_store %arg5[%c0_29, %c16, %c0_30], %41 {strides = array<i32>} : memref<1x64x64xbf16, #tpu.memory_space<vmem>>, vector<1x8x64xbf16>,
    %42 = vector.extract_strided_slice %8 {offsets = [96, 0], sizes = [16, 64], strides = [1, 1]} : vector<256x64xf32> to vector<16x64xf32>
    %43 = vector.extract_strided_slice %8 {offsets = [112, 0], sizes = [16, 64], strides = [1, 1]} : vector<256x64xf32> to vector<16x64xf32>
    %44 = arith.maximumf %42, %43 : vector<16x64xf32>
    %c0_31 = arith.constant 0 : index
    %c0_32 = arith.constant 0 : index
    %45 = vector.load %arg6[%c0_31, %c0_32] : memref<16x64xf32, #tpu.memory_space<vmem>>, vector<16x64xf32>
    tpu.vector_store %arg6[%c0_31, %c0_32], %44 {strides = array<i32>} : memref<16x64xf32, #tpu.memory_space<vmem>>, vector<16x64xf32>,
    %c0_33 = arith.constant 0 : index
    %c0_34 = arith.constant 0 : index
    %46 = tpu.strided_load %arg6[%c0_33, %c0_34] {strides = array<i32: 2, 1>} : memref<16x64xf32, #tpu.memory_space<vmem>>, vector<8x64xf32>
    %c1_35 = arith.constant 1 : index
    %c0_36 = arith.constant 0 : index
    %47 = tpu.strided_load %arg6[%c1_35, %c0_36] {strides = array<i32: 2, 1>} : memref<16x64xf32, #tpu.memory_space<vmem>>, vector<8x64xf32>
    %48 = arith.maximumf %46, %47 : vector<8x64xf32>
    %49 = arith.truncf %48 : vector<8x64xf32> to vector<8x64xbf16>
    %c0_37 = arith.constant 0 : index
    %c24 = arith.constant 24 : index
    %c0_38 = arith.constant 0 : index
    %50 = vector.load %arg5[%c0_37, %c24, %c0_38] : memref<1x64x64xbf16, #tpu.memory_space<vmem>>, vector<1x8x64xbf16>
    %51 = vector.shape_cast %50 : vector<1x8x64xbf16> to vector<8x64xbf16>
    %52 = vector.shape_cast %49 : vector<8x64xbf16> to vector<1x8x64xbf16>
    tpu.vector_store %arg5[%c0_37, %c24, %c0_38], %52 {strides = array<i32>} : memref<1x64x64xbf16, #tpu.memory_space<vmem>>, vector<1x8x64xbf16>,
    %53 = vector.extract_strided_slice %8 {offsets = [128, 0], sizes = [16, 64], strides = [1, 1]} : vector<256x64xf32> to vector<16x64xf32>
    %54 = vector.extract_strided_slice %8 {offsets = [144, 0], sizes = [16, 64], strides = [1, 1]} : vector<256x64xf32> to vector<16x64xf32>
    %55 = arith.maximumf %53, %54 : vector<16x64xf32>
    %c0_39 = arith.constant 0 : index
    %c0_40 = arith.constant 0 : index
    %56 = vector.load %arg6[%c0_39, %c0_40] : memref<16x64xf32, #tpu.memory_space<vmem>>, vector<16x64xf32>
    tpu.vector_store %arg6[%c0_39, %c0_40], %55 {strides = array<i32>} : memref<16x64xf32, #tpu.memory_space<vmem>>, vector<16x64xf32>,
    %c0_41 = arith.constant 0 : index
    %c0_42 = arith.constant 0 : index
    %57 = tpu.strided_load %arg6[%c0_41, %c0_42] {strides = array<i32: 2, 1>} : memref<16x64xf32, #tpu.memory_space<vmem>>, vector<8x64xf32>
    %c1_43 = arith.constant 1 : index
    %c0_44 = arith.constant 0 : index
    %58 = tpu.strided_load %arg6[%c1_43, %c0_44] {strides = array<i32: 2, 1>} : memref<16x64xf32, #tpu.memory_space<vmem>>, vector<8x64xf32>
    %59 = arith.maximumf %57, %58 : vector<8x64xf32>
    %60 = arith.truncf %59 : vector<8x64xf32> to vector<8x64xbf16>
    %c0_45 = arith.constant 0 : index
    %c32 = arith.constant 32 : index
    %c0_46 = arith.constant 0 : index
    %61 = vector.load %arg5[%c0_45, %c32, %c0_46] : memref<1x64x64xbf16, #tpu.memory_space<vmem>>, vector<1x8x64xbf16>
    %62 = vector.shape_cast %61 : vector<1x8x64xbf16> to vector<8x64xbf16>
    %63 = vector.shape_cast %60 : vector<8x64xbf16> to vector<1x8x64xbf16>
    tpu.vector_store %arg5[%c0_45, %c32, %c0_46], %63 {strides = array<i32>} : memref<1x64x64xbf16, #tpu.memory_space<vmem>>, vector<1x8x64xbf16>,
    %64 = vector.extract_strided_slice %8 {offsets = [160, 0], sizes = [16, 64], strides = [1, 1]} : vector<256x64xf32> to vector<16x64xf32>
    %65 = vector.extract_strided_slice %8 {offsets = [176, 0], sizes = [16, 64], strides = [1, 1]} : vector<256x64xf32> to vector<16x64xf32>
    %66 = arith.maximumf %64, %65 : vector<16x64xf32>
    %c0_47 = arith.constant 0 : index
    %c0_48 = arith.constant 0 : index
    %67 = vector.load %arg6[%c0_47, %c0_48] : memref<16x64xf32, #tpu.memory_space<vmem>>, vector<16x64xf32>
    tpu.vector_store %arg6[%c0_47, %c0_48], %66 {strides = array<i32>} : memref<16x64xf32, #tpu.memory_space<vmem>>, vector<16x64xf32>,
    %c0_49 = arith.constant 0 : index
    %c0_50 = arith.constant 0 : index
    %68 = tpu.strided_load %arg6[%c0_49, %c0_50] {strides = array<i32: 2, 1>} : memref<16x64xf32, #tpu.memory_space<vmem>>, vector<8x64xf32>
    %c1_51 = arith.constant 1 : index
    %c0_52 = arith.constant 0 : index
    %69 = tpu.strided_load %arg6[%c1_51, %c0_52] {strides = array<i32: 2, 1>} : memref<16x64xf32, #tpu.memory_space<vmem>>, vector<8x64xf32>
    %70 = arith.maximumf %68, %69 : vector<8x64xf32>
    %71 = arith.truncf %70 : vector<8x64xf32> to vector<8x64xbf16>
    %c0_53 = arith.constant 0 : index
    %c40 = arith.constant 40 : index
    %c0_54 = arith.constant 0 : index
    %72 = vector.load %arg5[%c0_53, %c40, %c0_54] : memref<1x64x64xbf16, #tpu.memory_space<vmem>>, vector<1x8x64xbf16>
    %73 = vector.shape_cast %72 : vector<1x8x64xbf16> to vector<8x64xbf16>
    %74 = vector.shape_cast %71 : vector<8x64xbf16> to vector<1x8x64xbf16>
    tpu.vector_store %arg5[%c0_53, %c40, %c0_54], %74 {strides = array<i32>} : memref<1x64x64xbf16, #tpu.memory_space<vmem>>, vector<1x8x64xbf16>,
    %75 = vector.extract_strided_slice %8 {offsets = [192, 0], sizes = [16, 64], strides = [1, 1]} : vector<256x64xf32> to vector<16x64xf32>
    %76 = vector.extract_strided_slice %8 {offsets = [208, 0], sizes = [16, 64], strides = [1, 1]} : vector<256x64xf32> to vector<16x64xf32>
    %77 = arith.maximumf %75, %76 : vector<16x64xf32>
    %c0_55 = arith.constant 0 : index
    %c0_56 = arith.constant 0 : index
    %78 = vector.load %arg6[%c0_55, %c0_56] : memref<16x64xf32, #tpu.memory_space<vmem>>, vector<16x64xf32>
    tpu.vector_store %arg6[%c0_55, %c0_56], %77 {strides = array<i32>} : memref<16x64xf32, #tpu.memory_space<vmem>>, vector<16x64xf32>,
    %c0_57 = arith.constant 0 : index
    %c0_58 = arith.constant 0 : index
    %79 = tpu.strided_load %arg6[%c0_57, %c0_58] {strides = array<i32: 2, 1>} : memref<16x64xf32, #tpu.memory_space<vmem>>, vector<8x64xf32>
    %c1_59 = arith.constant 1 : index
    %c0_60 = arith.constant 0 : index
    %80 = tpu.strided_load %arg6[%c1_59, %c0_60] {strides = array<i32: 2, 1>} : memref<16x64xf32, #tpu.memory_space<vmem>>, vector<8x64xf32>
    %81 = arith.maximumf %79, %80 : vector<8x64xf32>
    %82 = arith.truncf %81 : vector<8x64xf32> to vector<8x64xbf16>
    %c0_61 = arith.constant 0 : index
    %c48 = arith.constant 48 : index
    %c0_62 = arith.constant 0 : index
    %83 = vector.load %arg5[%c0_61, %c48, %c0_62] : memref<1x64x64xbf16, #tpu.memory_space<vmem>>, vector<1x8x64xbf16>
    %84 = vector.shape_cast %83 : vector<1x8x64xbf16> to vector<8x64xbf16>
    %85 = vector.shape_cast %82 : vector<8x64xbf16> to vector<1x8x64xbf16>
    tpu.vector_store %arg5[%c0_61, %c48, %c0_62], %85 {strides = array<i32>} : memref<1x64x64xbf16, #tpu.memory_space<vmem>>, vector<1x8x64xbf16>,
    %86 = vector.extract_strided_slice %8 {offsets = [224, 0], sizes = [16, 64], strides = [1, 1]} : vector<256x64xf32> to vector<16x64xf32>
    %87 = vector.extract_strided_slice %8 {offsets = [240, 0], sizes = [16, 64], strides = [1, 1]} : vector<256x64xf32> to vector<16x64xf32>
    %88 = arith.maximumf %86, %87 : vector<16x64xf32>
    %c0_63 = arith.constant 0 : index
    %c0_64 = arith.constant 0 : index
    %89 = vector.load %arg6[%c0_63, %c0_64] : memref<16x64xf32, #tpu.memory_space<vmem>>, vector<16x64xf32>
    tpu.vector_store %arg6[%c0_63, %c0_64], %88 {strides = array<i32>} : memref<16x64xf32, #tpu.memory_space<vmem>>, vector<16x64xf32>,
    %c0_65 = arith.constant 0 : index
    %c0_66 = arith.constant 0 : index
    %90 = tpu.strided_load %arg6[%c0_65, %c0_66] {strides = array<i32: 2, 1>} : memref<16x64xf32, #tpu.memory_space<vmem>>, vector<8x64xf32>
    %c1_67 = arith.constant 1 : index
    %c0_68 = arith.constant 0 : index
    %91 = tpu.strided_load %arg6[%c1_67, %c0_68] {strides = array<i32: 2, 1>} : memref<16x64xf32, #tpu.memory_space<vmem>>, vector<8x64xf32>
    %92 = arith.maximumf %90, %91 : vector<8x64xf32>
    %93 = arith.truncf %92 : vector<8x64xf32> to vector<8x64xbf16>
    %c0_69 = arith.constant 0 : index
    %c56 = arith.constant 56 : index
    %c0_70 = arith.constant 0 : index
    %94 = vector.load %arg5[%c0_69, %c56, %c0_70] : memref<1x64x64xbf16, #tpu.memory_space<vmem>>, vector<1x8x64xbf16>
    %95 = vector.shape_cast %94 : vector<1x8x64xbf16> to vector<8x64xbf16>
    %96 = vector.shape_cast %93 : vector<8x64xbf16> to vector<1x8x64xbf16>
    tpu.vector_store %arg5[%c0_69, %c56, %c0_70], %96 {strides = array<i32>} : memref<1x64x64xbf16, #tpu.memory_space<vmem>>, vector<1x8x64xbf16>,
    return
  }
  func.func @transform_0(%arg0: i32, %arg1: i32) -> (i32, i32, i32) {
    %c0_i32 = arith.constant 0 : i32
    %c0_i32_0 = arith.constant 0 : i32
    return %arg0, %arg1, %c0_i32 : i32, i32, i32
  }
  func.func @transform_1(%arg0: i32, %arg1: i32) -> (i32, i32) {
    %c0_i32 = arith.constant 0 : i32
    %c0_i32_0 = arith.constant 0 : i32
    %c0_i32_1 = arith.constant 0 : i32
    return %c0_i32, %c0_i32_0 : i32, i32
  }
  func.func @transform_2(%arg0: i32, %arg1: i32) -> (i32, i32) {
    %c0_i32 = arith.constant 0 : i32
    %c0_i32_0 = arith.constant 0 : i32
    %c0_i32_1 = arith.constant 0 : i32
    return %c0_i32, %c0_i32_0 : i32, i32
  }
  func.func @transform_3(%arg0: i32, %arg1: i32) -> (i32, i32, i32) {
    %c0_i32 = arith.constant 0 : i32
    %c0_i32_0 = arith.constant 0 : i32
    return %arg0, %arg1, %c0_i32 : i32, i32, i32
  }
}

</mosaic_0001>

<llo_original>
// kernel: tpu_custom_call.1
$region0: #{tpu_custom_call.1}
  #allocation0 [shape = 'u32[]', space=smem, size = 0x4, offset = 0x4, fixed_abs, tag = 'smem constant byte address 0x4 - core index']
  #allocation1 [shape = 'u32[144,128]{1,0:T(1,128)}', space=vmem, size = 0x12000, scoped, tag = 'internal scratch']
  #allocation2 [shape = 'f32[16,64]{1,0:T(8,128)}', space=vmem, size = 0x2000, scoped, tag = 'scratch operand']
  %s0 = inlined_call_operand.vmem [shape: bf16[2,256,32], index: 0, kind: input, shape index: {}]
  %s1 = inlined_call_operand.vmem [shape: bf16[32,64], index: 1, kind: input, shape index: {}]
  %s2 = inlined_call_operand.vmem [shape: f32[1,64], index: 2, kind: input, shape index: {}]
  %s3 = inlined_call_operand.hbm [shape: bf16[2,64,64], index: 3, kind: output, shape index: {}]
  %s4 = sld [smem:[#allocation0]]
  $region45: #{tpu_custom_call.1} parent=0
    _
  %s6 = ssub.s32 1, %s4
  %s7 = scalar_select 0, %s6, %s4
  $region1: #{tpu_custom_call.1} parent=0
    #allocation3 [shape = 'u8[32768]{0}', space=vmem, size = 0x8000, scoped, tag = 'output window, operand 0']
    #allocation4 [shape = 's32[2]{0}', space=sflag, size = 0x8, scoped, tag = 'scoped memory for tpu_custom_call.1']
    %8 = vsyncpa [#allocation4], 0
    %s9 = scalar_lea.sflag [#allocation4], 1
    %10 = vsyncpa %s9, 0
    loop: start=0, step=1, limit=4
    $region2: #{tpu_custom_call.1} parent=1 // loop_pre_header
      _
    $region3: #{tpu_custom_call.1} parent=1 // loop_header
      %s12 = sphi 0, %s16
      %p13 = scmp.ge.s32.totalorder %s12, 4
      %s19 = sphi 0, %s31
      %s20 = sphi 0, %s27
      %s21 = sphi 0, %s19
      %s22 = sphi 0, %s20
      %s23 = sphi 0, %s21
      %s24 = sphi 0, %s22
      %s36 = sphi 0, %s38
      %s39 = sphi 0, %s36
      %s40 = sphi 0, %s39
      %s56 = sphi 0, %s40
      %s60 = sphi 0, %s60
      %s62 = sphi 0, %s60
      %s63 = sphi 0, %s62
      %s77 = sphi 0, %s63
      %s81 = sphi 0, %s81
      %s83 = sphi 0, %s81
      %s84 = sphi 0, %s83
      %s98 = sphi 0, %s84
      %s106 = sphi 0, %s108
      %s109 = sphi 0, %s106
      %s110 = sphi 0, %s109
      %s126 = sphi 0, %s110
    $region4: #{tpu_custom_call.1} parent=1 // loop_header_branch
      %15 = sbr.rel (%p13) target = $region8
    $region5: #{tpu_custom_call.1} parent=1 // loop_body
      %s17 = ssub.s32 %s12, 1
      %s18 = ssub.s32 %s12, 2
      %s25 = sadd.s32 1, %s20
      %p26 = scmp.ge.s32.totalorder %s25, 1
      %s27 = scalar_select %p26, 0, %s25
      %s28 = sadd.s32 1, %s19
      %s29 = scalar_select %p26, %s28, %s19
      %p30 = scmp.ge.s32.totalorder %s29, 2
      %s31 = scalar_select %p30, 0, %s29
      %s32 = ssub.s32 %s19, %s31
      %s33 = ssub.s32 %s20, %s27
      %s34 = sor.u32 %s32, %s33
      %p35 = scmp.eq.s32.totalorder %s34, 0
      %s37 = sadd.s32 %s36, 1
      %s38 = scalar_select %p35, %s36, %s37
      %p41 = pneg %p35
      %p42 = scmp.eq.s32.totalorder %s12, 1
      %p43 = por %p41, %p42
      %p44 = scmp.ne.s32.totalorder %s36, %s39
      %p45 = scmp.eq.s32.totalorder %s12, 0
      %p46 = por %p44, %p45
      %p47 = scmp.ne.s32.totalorder %s36, %s39
      %p48 = scmp.eq.s32.totalorder %s17, 1
      %p49 = por %p47, %p48
      %p50 = scmp.ne.s32.totalorder %s39, %s40
      %p51 = scmp.eq.s32.totalorder %s17, 0
      %p52 = por %p50, %p51
      %p53 = scmp.ne.s32.totalorder %s39, %s40
      %p54 = scmp.eq.s32.totalorder %s18, 1
      %p55 = por %p53, %p54
      %p57 = scmp.ne.s32.totalorder %s40, %s56
      %p58 = scmp.eq.s32.totalorder %s18, 0
      %p59 = por %p57, %p58
      %s61 = sadd.s32 %s60, 1
      %p64 = scmp.eq.s32.totalorder %s12, 1
      %p65 = scmp.ne.s32.totalorder %s60, %s62
      %p66 = scmp.eq.s32.totalorder %s12, 0
      %p67 = por %p65, %p66
      %p68 = scmp.ne.s32.totalorder %s60, %s62
      %p69 = scmp.eq.s32.totalorder %s17, 1
      %p70 = por %p68, %p69
      %p71 = scmp.ne.s32.totalorder %s62, %s63
      %p72 = scmp.eq.s32.totalorder %s17, 0
      %p73 = por %p71, %p72
      %p74 = scmp.ne.s32.totalorder %s62, %s63
      %p75 = scmp.eq.s32.totalorder %s18, 1
      %p76 = por %p74, %p75
      %p78 = scmp.ne.s32.totalorder %s63, %s77
      %p79 = scmp.eq.s32.totalorder %s18, 0
      %p80 = por %p78, %p79
      %s82 = sadd.s32 %s81, 1
      %p85 = scmp.eq.s32.totalorder %s12, 1
      %p86 = scmp.ne.s32.totalorder %s81, %s83
      %p87 = scmp.eq.s32.totalorder %s12, 0
      %p88 = por %p86, %p87
      %p89 = scmp.ne.s32.totalorder %s81, %s83
      %p90 = scmp.eq.s32.totalorder %s17, 1
      %p91 = por %p89, %p90
      %p92 = scmp.ne.s32.totalorder %s83, %s84
      %p93 = scmp.eq.s32.totalorder %s17, 0
      %p94 = por %p92, %p93
      %p95 = scmp.ne.s32.totalorder %s83, %s84
      %p96 = scmp.eq.s32.totalorder %s18, 1
      %p97 = por %p95, %p96
      %p99 = scmp.ne.s32.totalorder %s84, %s98
      %p100 = scmp.eq.s32.totalorder %s18, 0
      %p101 = por %p99, %p100
      %s102 = ssub.s32 %s19, %s31
      %s103 = ssub.s32 %s20, %s27
      %s104 = sor.u32 %s102, %s103
      %p105 = scmp.eq.s32.totalorder %s104, 0
      %s107 = sadd.s32 %s106, 1
      %s108 = scalar_select %p105, %s106, %s107
      %p111 = pneg %p105
      %p112 = scmp.eq.s32.totalorder %s12, 1
      %p113 = por %p111, %p112
      %p114 = scmp.ne.s32.totalorder %s106, %s109
      %p115 = scmp.eq.s32.totalorder %s12, 0
      %p116 = por %p114, %p115
      %p117 = scmp.ne.s32.totalorder %s106, %s109
      %p118 = scmp.eq.s32.totalorder %s17, 1
      %p119 = por %p117, %p118
      %p120 = scmp.ne.s32.totalorder %s109, %s110
      %p121 = scmp.eq.s32.totalorder %s17, 0
      %p122 = por %p120, %p121
      %p123 = scmp.ne.s32.totalorder %s109, %s110
      %p124 = scmp.eq.s32.totalorder %s18, 1
      %p125 = por %p123, %p124
      %p127 = scmp.ne.s32.totalorder %s110, %s126
      %p128 = scmp.eq.s32.totalorder %s18, 0
      %p129 = por %p127, %p128
      %p130 = scmp.le.s32.totalorder 1, %s12
      %p131 = scmp.lt.s32.totalorder %s12, 3
      %p132 = pnand %p130, %p131
      %p133 = pneg %p132
      // Predicated region
      $region9: #{tpu_custom_call.1} parent=5 // pred_check
        _
      $region10: #{tpu_custom_call.1} parent=5 // pred_check_branch
        %135 = sbr.rel (%p132) target = $region12
      $region11: #{tpu_custom_call.1} parent=5 // pred_region
        %s136 = ssub.s32 %s12, 1
        // Predicated region
        $region13: #{tpu_custom_call.1} parent=11 // pred_check
          %p137 = pneg %p73
        $region14: #{tpu_custom_call.1} parent=11 // pred_check_branch
          %139 = sbr.rel (%p137) target = $region16
        $region15: #{tpu_custom_call.1} parent=11 // pred_region
          _
        $region16: #{tpu_custom_call.1} parent=11 // pred_fallthru
          _
        // Predicated region
        $region17: #{tpu_custom_call.1} parent=11 // pred_check
          %p140 = pneg %p94
        $region18: #{tpu_custom_call.1} parent=11 // pred_check_branch
          %142 = sbr.rel (%p140) target = $region20
        $region19: #{tpu_custom_call.1} parent=11 // pred_region
          _
        $region20: #{tpu_custom_call.1} parent=11 // pred_fallthru
          _
      $region12: #{tpu_custom_call.1} parent=5 // pred_fallthru
        _
      %p143 = scmp.lt.s32.totalorder %s12, 2
      // Predicated region
      $region21: #{tpu_custom_call.1} parent=5 // pred_check
        %p144 = pneg %p143
      $region22: #{tpu_custom_call.1} parent=5 // pred_check_branch
        %146 = sbr.rel (%p144) target = $region24
      $region23: #{tpu_custom_call.1} parent=5 // pred_region
        // Predicated region
        $region25: #{tpu_custom_call.1} parent=23 // pred_check
          %p147 = pneg %p46
        $region26: #{tpu_custom_call.1} parent=23 // pred_check_branch
          %149 = sbr.rel (%p147) target = $region28
        $region27: #{tpu_custom_call.1} parent=23 // pred_region
          %s150 = smul.u32 32, %s20
          %p151 = scmp.lt.s32.totalorder %s19, 1
          %s152 = scalar_select %p151, %s19, 1
          %p153 = scmp.lt.s32.totalorder %s150, 31
          %s154 = scalar_select %p153, %s150, 31
          %s155 = smul.addr %s152, 32
          %s156 = sadd.s32 %s154, %s155
          %s157 = smul.addr %s156, 4
          %s158 = scalar_lea.vmem %s0, %s157
          %s159 = smul.u32 32, %s20
        $region28: #{tpu_custom_call.1} parent=23 // pred_fallthru
          _
      $region24: #{tpu_custom_call.1} parent=5 // pred_fallthru
        _
      %p160 = scmp.le.s32.totalorder 1, %s12
      %p161 = scmp.lt.s32.totalorder %s12, 3
      %p162 = pnand %p160, %p161
      %p163 = pneg %p162
      // Predicated region
      $region29: #{tpu_custom_call.1} parent=5 // pred_check
        _
      $region30: #{tpu_custom_call.1} parent=5 // pred_check_branch
        %165 = sbr.rel (%p162) target = $region32
      $region31: #{tpu_custom_call.1} parent=5 // pred_region
        %s166 = ssub.s32 %s12, 1
        %s167 = smul.u32 32, %s22
        %p168 = scmp.lt.s32.totalorder %s21, 1
        %s169 = scalar_select %p168, %s21, 1
        %p170 = scmp.lt.s32.totalorder %s167, 31
        %s171 = scalar_select %p170, %s167, 31
        %s172 = smul.addr %s169, 32
        %s173 = sadd.s32 %s171, %s172
        %s174 = smul.addr %s173, 4
        %s175 = scalar_lea.vmem %s0, %s174
        %p176 = pneg %p52
        %p177 = pneg %p49
        %p178 = pneg %p73
        %p179 = pneg %p70
        %p180 = pneg %p94
        %p181 = pneg %p91
        %p182 = pneg %p122
        %p183 = pneg %p119
        %s184 = sand.u32 %s109, 1
        %s185 = scalar_lea.sflag [#allocation4], %s184
        %s186 = sand.u32 %s109, 1
        %s187 = smul.addr %s186, 32
        %s188 = scalar_lea.vmem [#allocation3], %s187
        %s189 = smul.u32 32, %s22
        %p190 = scmp.lt.s32.totalorder %s21, 1
        %s191 = scalar_select %p190, %s21, 1
        %p192 = scmp.lt.s32.totalorder %s189, 31
        %s193 = scalar_select %p192, %s189, 31
        %s194 = smul.addr %s191, 32
        %s195 = sadd.s32 %s193, %s194
        %s196 = smul.addr %s195, 4
        %s197 = scalar_lea.vmem %s0, %s196
        %s198 = smul.u32 32, %s22
        %s199 = smul.u32 8, %s22
        %v201 = vld [vmem:[%s197] sm:$0xf]
        %v202 = vld [vmem:[%s197 + $0x4] sm:$0xf]
        %v203 = vld [vmem:[%s197 + $0x8] sm:$0xf]
        %v204 = vld [vmem:[%s197 + $0xc] sm:$0xf]
        %v205 = vld [vmem:[%s197 + $0x10] sm:$0xf]
        %v206 = vld [vmem:[%s197 + $0x14] sm:$0xf]
        %v207 = vld [vmem:[%s197 + $0x18] sm:$0xf]
        %v208 = vld [vmem:[%s197 + $0x1c] sm:$0xf]
        %v209 = vld [vmem:[%s197 + $0x20] sm:$0xf]
        %v210 = vld [vmem:[%s197 + $0x24] sm:$0xf]
        %v211 = vld [vmem:[%s197 + $0x28] sm:$0xf]
        %v212 = vld [vmem:[%s197 + $0x2c] sm:$0xf]
        %v213 = vld [vmem:[%s197 + $0x30] sm:$0xf]
        %v214 = vld [vmem:[%s197 + $0x34] sm:$0xf]
        %v215 = vld [vmem:[%s197 + $0x38] sm:$0xf]
        %v216 = vld [vmem:[%s197 + $0x3c] sm:$0xf]
        %v217 = vld [vmem:[%s197 + $0x40] sm:$0xf]
        %v218 = vld [vmem:[%s197 + $0x44] sm:$0xf]
        %v219 = vld [vmem:[%s197 + $0x48] sm:$0xf]
        %v220 = vld [vmem:[%s197 + $0x4c] sm:$0xf]
        %v221 = vld [vmem:[%s197 + $0x50] sm:$0xf]
        %v222 = vld [vmem:[%s197 + $0x54] sm:$0xf]
        %v223 = vld [vmem:[%s197 + $0x58] sm:$0xf]
        %v224 = vld [vmem:[%s197 + $0x5c] sm:$0xf]
        %v225 = vld [vmem:[%s197 + $0x60] sm:$0xf]
        %v226 = vld [vmem:[%s197 + $0x64] sm:$0xf]
        %v227 = vld [vmem:[%s197 + $0x68] sm:$0xf]
        %v228 = vld [vmem:[%s197 + $0x6c] sm:$0xf]
        %v229 = vld [vmem:[%s197 + $0x70] sm:$0xf]
        %v230 = vld [vmem:[%s197 + $0x74] sm:$0xf]
        %v231 = vld [vmem:[%s197 + $0x78] sm:$0xf]
        %v232 = vld [vmem:[%s197 + $0x7c] sm:$0xf]
        %v233 = vld [vmem:[%s1] sm:$0xf]
        %v234 = vld [vmem:[%s1 + $0x4] sm:$0xf]
        %v235 = vld [vmem:[%s1 + $0x8] sm:$0xf]
        %v236 = vld [vmem:[%s1 + $0xc] sm:$0xf]
        %v237 = vld [vmem:[%s2] sm:$0x1]
        %v239 = vlaneseq
        %v240 = vshrl.u32 %v239, 7
        %v241 = vsub.s32 0, %v240
        %v242 = vrot.slane %v237, %v241
        %v276 = vunpack.c.l.b16 %v201
        %v277 = vunpack.c.l.b16 %v202
        %v278 = vunpack.c.l.b16 %v203
        %v279 = vunpack.c.l.b16 %v204
        %v280 = vunpack.c.l.b16 %v205
        %v281 = vunpack.c.l.b16 %v206
        %v282 = vunpack.c.l.b16 %v207
        %v283 = vunpack.c.l.b16 %v208
        %v284 = vunpack.c.l.b16 %v209
        %v285 = vunpack.c.l.b16 %v210
        %v286 = vunpack.c.l.b16 %v211
        %v287 = vunpack.c.l.b16 %v212
        %v288 = vunpack.c.l.b16 %v213
        %v289 = vunpack.c.l.b16 %v214
        %v290 = vunpack.c.l.b16 %v215
        %v291 = vunpack.c.l.b16 %v216
        %v292 = vunpack.c.l.b16 %v217
        %v293 = vunpack.c.l.b16 %v218
        %v294 = vunpack.c.l.b16 %v219
        %v295 = vunpack.c.l.b16 %v220
        %v296 = vunpack.c.l.b16 %v221
        %v297 = vunpack.c.l.b16 %v222
        %v298 = vunpack.c.l.b16 %v223
        %v299 = vunpack.c.l.b16 %v224
        %v300 = vunpack.c.l.b16 %v225
        %v301 = vunpack.c.l.b16 %v226
        %v302 = vunpack.c.l.b16 %v227
        %v303 = vunpack.c.l.b16 %v228
        %v304 = vunpack.c.l.b16 %v229
        %v305 = vunpack.c.l.b16 %v230
        %v306 = vunpack.c.l.b16 %v231
        %v307 = vunpack.c.l.b16 %v232
        %v308 = vpack.c.b16 %v277, %v276
        %v309 = vpack.c.b16 %v279, %v278
        %v310 = vpack.c.b16 %v281, %v280
        %v311 = vpack.c.b16 %v283, %v282
        %v312 = vpack.c.b16 %v285, %v284
        %v313 = vpack.c.b16 %v287, %v286
        %v314 = vpack.c.b16 %v289, %v288
        %v315 = vpack.c.b16 %v291, %v290
        %v316 = vpack.c.b16 %v293, %v292
        %v317 = vpack.c.b16 %v295, %v294
        %v318 = vpack.c.b16 %v297, %v296
        %v319 = vpack.c.b16 %v299, %v298
        %v320 = vpack.c.b16 %v301, %v300
        %v321 = vpack.c.b16 %v303, %v302
        %v322 = vpack.c.b16 %v305, %v304
        %v323 = vpack.c.b16 %v307, %v306
        %v328 = vunpack.c.l.b16 %v233
        %v329 = vunpack.c.l.b16 %v234
        %v330 = vunpack.c.l.b16 %v235
        %v331 = vunpack.c.l.b16 %v236
        %v332 = vpack.c.b16 %v329, %v328
        %v333 = vpack.c.b16 %v331, %v330
        %vm336 = vcmask 261120
        %v338 = vsel %vm336, %v308, 0
        %v341 = vsel %vm336, %v309, 0
        %v344 = vsel %vm336, %v310, 0
        %v347 = vsel %vm336, %v311, 0
        %v350 = vsel %vm336, %v312, 0
        %v353 = vsel %vm336, %v313, 0
        %v356 = vsel %vm336, %v314, 0
        %v359 = vsel %vm336, %v315, 0
        %v362 = vsel %vm336, %v316, 0
        %v365 = vsel %vm336, %v317, 0
        %v368 = vsel %vm336, %v318, 0
        %v371 = vsel %vm336, %v319, 0
        %v374 = vsel %vm336, %v320, 0
        %v377 = vsel %vm336, %v321, 0
        %v380 = vsel %vm336, %v322, 0
        %v383 = vsel %vm336, %v323, 0
        %385 = vmatprep.subr.bf16.mxu0 0
        %386 = vmatpush1.bf16.msra.mxu0 %v332
        %387 = vmatprep.subr.bf16.mxu0 0
        %388 = vmatpush1.bf16.msra.mxu0 %v333
        %389 = vmatprep.subr.bf16.mxu0 0
        %390 = vmatpush1.bf16.msra.mxu0 0
        %391 = vmatprep.subr.bf16.mxu0 0
        %392 = vmatpush1.bf16.msra.mxu0 0
        %393 = vmatprep.subr.bf16.mxu0 0
        %394 = vmatpush1.bf16.msra.mxu0 0
        %395 = vmatprep.subr.bf16.mxu0 0
        %396 = vmatpush1.bf16.msra.mxu0 0
        %397 = vmatprep.subr.bf16.mxu0 0
        %398 = vmatpush1.bf16.msra.mxu0 0
        %399 = vmatprep.subr.bf16.mxu0 0
        %400 = vmatpush1.bf16.msra.mxu0 0
        %401 = vmatprep.subr.bf16.mxu0 0
        %402 = vmatpush1.bf16.msra.mxu0 0
        %403 = vmatprep.subr.bf16.mxu0 0
        %404 = vmatpush1.bf16.msra.mxu0 0
        %405 = vmatprep.subr.bf16.mxu0 0
        %406 = vmatpush1.bf16.msra.mxu0 0
        %407 = vmatprep.subr.bf16.mxu0 0
        %408 = vmatpush1.bf16.msra.mxu0 0
        %409 = vmatprep.subr.bf16.mxu0 0
        %410 = vmatpush1.bf16.msra.mxu0 0
        %411 = vmatprep.subr.bf16.mxu0 0
        %412 = vmatpush1.bf16.msra.mxu0 0
        %413 = vmatprep.subr.bf16.mxu0 0
        %414 = vmatpush1.bf16.msra.mxu0 0
        %415 = vmatprep.subr.bf16.mxu0 0
        %416 = vmatpush1.bf16.msra.mxu0 0
        %417 = vmatprep.mubr.bf16.mxu0 0
        %418 = vmatmul.mubr.bf16.gmra.mrb[0].mxu0 %v338
        %v419 = vpop.f32.mrb[0].mxu0
        %v420 = vadd.f32 %v242, %v419
        %v421 = vpop.f32.mrb[0].mxu0
        %v422 = vpop.f32.mrb[0].mxu0
        %v423 = vadd.f32 %v242, %v422
        %v424 = vpop.f32.mrb[0].mxu0
        %425 = vmatprep.mubr.bf16.mxu0 0
        %426 = vmatmul.mubr.bf16.gmra.mrb[0].mxu0 %v341
        %v427 = vpop.f32.mrb[0].mxu0
        %v428 = vadd.f32 %v242, %v427
        %v429 = vpop.f32.mrb[0].mxu0
        %v430 = vpop.f32.mrb[0].mxu0
        %v431 = vadd.f32 %v242, %v430
        %v432 = vpop.f32.mrb[0].mxu0
        %433 = vmatprep.mubr.bf16.mxu0 0
        %434 = vmatmul.mubr.bf16.gmra.mrb[0].mxu0 %v344
        %v435 = vpop.f32.mrb[0].mxu0
        %v436 = vadd.f32 %v242, %v435
        %v437 = vpop.f32.mrb[0].mxu0
        %v438 = vpop.f32.mrb[0].mxu0
        %v439 = vadd.f32 %v242, %v438
        %v440 = vpop.f32.mrb[0].mxu0
        %441 = vmatprep.mubr.bf16.mxu0 0
        %442 = vmatmul.mubr.bf16.gmra.mrb[0].mxu0 %v347
        %v443 = vpop.f32.mrb[0].mxu0
        %v444 = vadd.f32 %v242, %v443
        %v445 = vpop.f32.mrb[0].mxu0
        %v446 = vpop.f32.mrb[0].mxu0
        %v447 = vadd.f32 %v242, %v446
        %v448 = vpop.f32.mrb[0].mxu0
        %449 = vmatprep.mubr.bf16.mxu0 0
        %450 = vmatmul.mubr.bf16.gmra.mrb[0].mxu0 %v350
        %v451 = vpop.f32.mrb[0].mxu0
        %v452 = vadd.f32 %v242, %v451
        %v453 = vpop.f32.mrb[0].mxu0
        %v454 = vpop.f32.mrb[0].mxu0
        %v455 = vadd.f32 %v242, %v454
        %v456 = vpop.f32.mrb[0].mxu0
        %457 = vmatprep.mubr.bf16.mxu0 0
        %458 = vmatmul.mubr.bf16.gmra.mrb[0].mxu0 %v353
        %v459 = vpop.f32.mrb[0].mxu0
        %v460 = vadd.f32 %v242, %v459
        %v461 = vpop.f32.mrb[0].mxu0
        %v462 = vpop.f32.mrb[0].mxu0
        %v463 = vadd.f32 %v242, %v462
        %v464 = vpop.f32.mrb[0].mxu0
        %465 = vmatprep.mubr.bf16.mxu0 0
        %466 = vmatmul.mubr.bf16.gmra.mrb[0].mxu0 %v356
        %v467 = vpop.f32.mrb[0].mxu0
        %v468 = vadd.f32 %v242, %v467
        %v469 = vpop.f32.mrb[0].mxu0
        %v470 = vpop.f32.mrb[0].mxu0
        %v471 = vadd.f32 %v242, %v470
        %v472 = vpop.f32.mrb[0].mxu0
        %473 = vmatprep.mubr.bf16.mxu0 0
        %474 = vmatmul.mubr.bf16.gmra.mrb[0].mxu0 %v359
        %v475 = vpop.f32.mrb[0].mxu0
        %v476 = vadd.f32 %v242, %v475
        %v477 = vpop.f32.mrb[0].mxu0
        %v478 = vpop.f32.mrb[0].mxu0
        %v479 = vadd.f32 %v242, %v478
        %v480 = vpop.f32.mrb[0].mxu0
        %481 = vmatprep.mubr.bf16.mxu0 0
        %482 = vmatmul.mubr.bf16.gmra.mrb[0].mxu0 %v362
        %v483 = vpop.f32.mrb[0].mxu0
        %v484 = vadd.f32 %v242, %v483
        %v485 = vpop.f32.mrb[0].mxu0
        %v486 = vpop.f32.mrb[0].mxu0
        %v487 = vadd.f32 %v242, %v486
        %v488 = vpop.f32.mrb[0].mxu0
        %489 = vmatprep.mubr.bf16.mxu0 0
        %490 = vmatmul.mubr.bf16.gmra.mrb[0].mxu0 %v365
        %v491 = vpop.f32.mrb[0].mxu0
        %v492 = vadd.f32 %v242, %v491
        %v493 = vpop.f32.mrb[0].mxu0
        %v494 = vpop.f32.mrb[0].mxu0
        %v495 = vadd.f32 %v242, %v494
        %v496 = vpop.f32.mrb[0].mxu0
        %497 = vmatprep.mubr.bf16.mxu0 0
        %498 = vmatmul.mubr.bf16.gmra.mrb[0].mxu0 %v368
        %v499 = vpop.f32.mrb[0].mxu0
        %v500 = vadd.f32 %v242, %v499
        %v501 = vpop.f32.mrb[0].mxu0
        %v502 = vpop.f32.mrb[0].mxu0
        %v503 = vadd.f32 %v242, %v502
        %v504 = vpop.f32.mrb[0].mxu0
        %505 = vmatprep.mubr.bf16.mxu0 0
        %506 = vmatmul.mubr.bf16.gmra.mrb[0].mxu0 %v371
        %v507 = vpop.f32.mrb[0].mxu0
        %v508 = vadd.f32 %v242, %v507
        %v509 = vpop.f32.mrb[0].mxu0
        %v510 = vpop.f32.mrb[0].mxu0
        %v511 = vadd.f32 %v242, %v510
        %v512 = vpop.f32.mrb[0].mxu0
        %513 = vmatprep.mubr.bf16.mxu0 0
        %514 = vmatmul.mubr.bf16.gmra.mrb[0].mxu0 %v374
        %v515 = vpop.f32.mrb[0].mxu0
        %v516 = vadd.f32 %v242, %v515
        %v517 = vpop.f32.mrb[0].mxu0
        %v518 = vpop.f32.mrb[0].mxu0
        %v519 = vadd.f32 %v242, %v518
        %v520 = vpop.f32.mrb[0].mxu0
        %521 = vmatprep.mubr.bf16.mxu0 0
        %522 = vmatmul.mubr.bf16.gmra.mrb[0].mxu0 %v377
        %v523 = vpop.f32.mrb[0].mxu0
        %v524 = vadd.f32 %v242, %v523
        %v525 = vpop.f32.mrb[0].mxu0
        %v526 = vpop.f32.mrb[0].mxu0
        %v527 = vadd.f32 %v242, %v526
        %v528 = vpop.f32.mrb[0].mxu0
        %529 = vmatprep.mubr.bf16.mxu0 0
        %530 = vmatmul.mubr.bf16.gmra.mrb[0].mxu0 %v380
        %v531 = vpop.f32.mrb[0].mxu0
        %v532 = vadd.f32 %v242, %v531
        %v533 = vpop.f32.mrb[0].mxu0
        %v534 = vpop.f32.mrb[0].mxu0
        %v535 = vadd.f32 %v242, %v534
        %v536 = vpop.f32.mrb[0].mxu0
        %537 = vmatprep.mubr.bf16.mxu0 0
        %538 = vmatmul.mubr.bf16.gmra.mrb[0].mxu0 %v383
        %v539 = vpop.f32.mrb[0].mxu0
        %v540 = vadd.f32 %v242, %v539
        %v541 = vpop.f32.mrb[0].mxu0
        %v542 = vpop.f32.mrb[0].mxu0
        %v543 = vadd.f32 %v242, %v542
        %v544 = vpop.f32.mrb[0].mxu0
        %545 = vdwg.mxu0
        %v546 = vmax.f32 %v420, 0.0
        %v547 = vmax.f32 %v423, 0.0
        %v548 = vmax.f32 %v428, 0.0
        %v549 = vmax.f32 %v431, 0.0
        %v550 = vmax.f32 %v436, 0.0
        %v551 = vmax.f32 %v439, 0.0
        %v552 = vmax.f32 %v444, 0.0
        %v553 = vmax.f32 %v447, 0.0
        %v554 = vmax.f32 %v452, 0.0
        %v555 = vmax.f32 %v455, 0.0
        %v556 = vmax.f32 %v460, 0.0
        %v557 = vmax.f32 %v463, 0.0
        %v558 = vmax.f32 %v468, 0.0
        %v559 = vmax.f32 %v471, 0.0
        %v560 = vmax.f32 %v476, 0.0
        %v561 = vmax.f32 %v479, 0.0
        %v562 = vmax.f32 %v484, 0.0
        %v563 = vmax.f32 %v487, 0.0
        %v564 = vmax.f32 %v492, 0.0
        %v565 = vmax.f32 %v495, 0.0
        %v566 = vmax.f32 %v500, 0.0
        %v567 = vmax.f32 %v503, 0.0
        %v568 = vmax.f32 %v508, 0.0
        %v569 = vmax.f32 %v511, 0.0
        %v570 = vmax.f32 %v516, 0.0
        %v571 = vmax.f32 %v519, 0.0
        %v572 = vmax.f32 %v524, 0.0
        %v573 = vmax.f32 %v527, 0.0
        %v574 = vmax.f32 %v532, 0.0
        %v575 = vmax.f32 %v535, 0.0
        %v576 = vmax.f32 %v540, 0.0
        %v577 = vmax.f32 %v543, 0.0
        %v578 = vmax.f32 %v546, %v548
        %v579 = vmax.f32 %v547, %v549
        %vm580 = vcmask 523264
        %581 = vst.msk [vmem:[#allocation2] sm:$0xff] %vm580, %v578
        %582 = vst.msk [vmem:[#allocation2 + $0x8] sm:$0xff] %vm580, %v579
        %v583 = vld [vmem:[#allocation2] ss:$2 sm:$0xff]
        %s584 = scalar_lea.vmem [#allocation2], 1
        %v585 = vld [vmem:[%s584] ss:$2 sm:$0xff]
        %v586 = vmax.f32 %v583, %v585
        %v587 = vpack.c.bf16 %v586, %v586
        %vm588 = vcmask 519168
        %589 = vst.msk [vmem:[%s188] sm:$0xf] %vm588, %v587
        %v590 = vmax.f32 %v550, %v552
        %v591 = vmax.f32 %v551, %v553
        %592 = vst.msk [vmem:[#allocation2] sm:$0xff] %vm580, %v590
        %593 = vst.msk [vmem:[#allocation2 + $0x8] sm:$0xff] %vm580, %v591
        %v594 = vld [vmem:[#allocation2] ss:$2 sm:$0xff]
        %v595 = vld [vmem:[%s584] ss:$2 sm:$0xff]
        %v596 = vmax.f32 %v594, %v595
        %v597 = vpack.c.bf16 %v596, %v596
        %598 = vst.msk [vmem:[%s188 + $0x4] sm:$0xf] %vm588, %v597
        %v599 = vmax.f32 %v554, %v556
        %v600 = vmax.f32 %v555, %v557
        %601 = vst.msk [vmem:[#allocation2] sm:$0xff] %vm580, %v599
        %602 = vst.msk [vmem:[#allocation2 + $0x8] sm:$0xff] %vm580, %v600
        %v603 = vld [vmem:[#allocation2] ss:$2 sm:$0xff]
        %v604 = vld [vmem:[%s584] ss:$2 sm:$0xff]
        %v605 = vmax.f32 %v603, %v604
        %v606 = vpack.c.bf16 %v605, %v605
        %607 = vst.msk [vmem:[%s188 + $0x8] sm:$0xf] %vm588, %v606
        %v608 = vmax.f32 %v558, %v560
        %v609 = vmax.f32 %v559, %v561
        %610 = vst.msk [vmem:[#allocation2] sm:$0xff] %vm580, %v608
        %611 = vst.msk [vmem:[#allocation2 + $0x8] sm:$0xff] %vm580, %v609
        %v612 = vld [vmem:[#allocation2] ss:$2 sm:$0xff]
        %v613 = vld [vmem:[%s584] ss:$2 sm:$0xff]
        %v614 = vmax.f32 %v612, %v613
        %v615 = vpack.c.bf16 %v614, %v614
        %616 = vst.msk [vmem:[%s188 + $0xc] sm:$0xf] %vm588, %v615
        %v617 = vmax.f32 %v562, %v564
        %v618 = vmax.f32 %v563, %v565
        %619 = vst.msk [vmem:[#allocation2] sm:$0xff] %vm580, %v617
        %620 = vst.msk [vmem:[#allocation2 + $0x8] sm:$0xff] %vm580, %v618
        %v621 = vld [vmem:[#allocation2] ss:$2 sm:$0xff]
        %v622 = vld [vmem:[%s584] ss:$2 sm:$0xff]
        %v623 = vmax.f32 %v621, %v622
        %v624 = vpack.c.bf16 %v623, %v623
        %625 = vst.msk [vmem:[%s188 + $0x10] sm:$0xf] %vm588, %v624
        %v626 = vmax.f32 %v566, %v568
        %v627 = vmax.f32 %v567, %v569
        %628 = vst.msk [vmem:[#allocation2] sm:$0xff] %vm580, %v626
        %629 = vst.msk [vmem:[#allocation2 + $0x8] sm:$0xff] %vm580, %v627
        %v630 = vld [vmem:[#allocation2] ss:$2 sm:$0xff]
        %v631 = vld [vmem:[%s584] ss:$2 sm:$0xff]
        %v632 = vmax.f32 %v630, %v631
        %v633 = vpack.c.bf16 %v632, %v632
        %634 = vst.msk [vmem:[%s188 + $0x14] sm:$0xf] %vm588, %v633
        %v635 = vmax.f32 %v570, %v572
        %v636 = vmax.f32 %v571, %v573
        %637 = vst.msk [vmem:[#allocation2] sm:$0xff] %vm580, %v635
        %638 = vst.msk [vmem:[#allocation2 + $0x8] sm:$0xff] %vm580, %v636
        %v639 = vld [vmem:[#allocation2] ss:$2 sm:$0xff]
        %v640 = vld [vmem:[%s584] ss:$2 sm:$0xff]
        %v641 = vmax.f32 %v639, %v640
        %v642 = vpack.c.bf16 %v641, %v641
        %643 = vst.msk [vmem:[%s188 + $0x18] sm:$0xf] %vm588, %v642
        %v644 = vmax.f32 %v574, %v576
        %v645 = vmax.f32 %v575, %v577
        %646 = vst.msk [vmem:[#allocation2] sm:$0xff] %vm580, %v644
        %647 = vst.msk [vmem:[#allocation2 + $0x8] sm:$0xff] %vm580, %v645
        %v648 = vld [vmem:[#allocation2] ss:$2 sm:$0xff]
        %v649 = vld [vmem:[%s584] ss:$2 sm:$0xff]
        %v650 = vmax.f32 %v648, %v649
        %v651 = vpack.c.bf16 %v650, %v650
        %652 = vst.msk [vmem:[%s188 + $0x1c] sm:$0xf] %vm588, %v651
        %s653 = sand.u32 %s109, 1
        %s654 = scalar_lea.sflag [#allocation4], %s653
        %s655 = sand.u32 %s109, 1
        %s656 = smul.addr %s655, 32
        %s657 = scalar_lea.vmem [#allocation3], %s656
        // Predicated region
        $region33: #{tpu_custom_call.1} parent=31 // pred_check
          %p658 = pneg %p119
        $region34: #{tpu_custom_call.1} parent=31 // pred_check_branch
          %660 = sbr.rel (%p658) target = $region36
        $region35: #{tpu_custom_call.1} parent=31 // pred_region
          %s661 = smul.u32 8, %s22
          %s663 = ssub.s32 512, 512
          %664 = vsyncadd %s654, %s663
          %s665 = smul.addr %s21, 8
          %s666 = sadd.s32 %s661, %s665
          %s667 = smul.addr %s666, 64
          %s668 = scalar_lea.hbm %s3, %s667
          %s669 = sshll.u32 %s657, 4
          %s670 = int_to_ptr.vmem [resolvable:$true] %s669
          %675 = dma.vmem_to_hbm [thread:$0]  %s670, 512, %s668, %s654, 64, 64, 4
        $region36: #{tpu_custom_call.1} parent=31 // pred_fallthru
          _
      $region32: #{tpu_custom_call.1} parent=5 // pred_fallthru
        _
      %p676 = scmp.le.s32.totalorder 2, %s12
      // Predicated region
      $region37: #{tpu_custom_call.1} parent=5 // pred_check
        %p677 = pneg %p676
      $region38: #{tpu_custom_call.1} parent=5 // pred_check_branch
        %679 = sbr.rel (%p677) target = $region40
      $region39: #{tpu_custom_call.1} parent=5 // pred_region
        %s680 = ssub.s32 %s12, 2
        // Predicated region
        $region41: #{tpu_custom_call.1} parent=39 // pred_check
          %p681 = pneg %p125
        $region42: #{tpu_custom_call.1} parent=39 // pred_check_branch
          %683 = sbr.rel (%p681) target = $region44
        $region43: #{tpu_custom_call.1} parent=39 // pred_region
          %s684 = sand.u32 %s110, 1
          %s685 = scalar_lea.sflag [#allocation4], %s684
          %s686 = sand.u32 %s110, 1
          %s687 = smul.addr %s686, 32
          %s688 = scalar_lea.vmem [#allocation3], %s687
          %689 = dma.done %s685, 512
        $region44: #{tpu_custom_call.1} parent=39 // pred_fallthru
          _
      $region40: #{tpu_custom_call.1} parent=5 // pred_fallthru
        _
    $region6: #{tpu_custom_call.1} parent=1 // loop_footer
      %s16 = sadd.s32 1, %s12
    $region7: #{tpu_custom_call.1} parent=1 // loop_footer_branch
      %11 = sbr.rel target = $region3
    $region8: #{tpu_custom_call.1} parent=1 // loop_exit
      _
    %690 = vsyncpa [#allocation4], 1
    %s691 = scalar_lea.sflag [#allocation4], 1
    %692 = vsyncpa %s691, 1

</llo_original>
